<compile_context>
chip_gen: v7x
topology: tpu7x:2x2x1
jax: 0.10.0
libtpu: 0.0.40
codegen_flags: <defaults>
</compile_context>

<pallas_src>
import functools

import jax
import jax.numpy as jnp
from jax.experimental import pallas as pl
from jax.experimental.pallas import tpu as pltpu

LANE = 128


# ----------------------------- Pallas kernel -----------------------------

def lstm_decoder_kernel(x2d_ref, enc_ref, wih_ref, whh_ref, bg_ref,
                        wcomb_ref, wfin_enc_ref, bcomb_ref, out_ref, *,
                        seq_len, num_features, hidden_size):
    """Fused LSTM recurrence -> (folded rnn_fc + final_layer) -> dropout(eval).

    x2d_ref      : (T*F, I)          dec_inp flattened (t-major, f-minor), f32
    enc_ref      : (T, 1024)         enc_out zero-padded on the K dim, f32
    wih_ref      : (I, 4H)           W_ih^T, f32
    whh_ref      : (H, 4H)           W_hh^T, f32
    bg_ref       : (1, 4H)           b_ih + b_hh, f32
    wcomb_ref    : (F*H, 128)        W_fc^T @ W_final_hid^T  (lane-padded), bf16
    wfin_enc_ref : (1024, 128)       W_final^T rows for enc_out (K- and lane-padded), bf16
    bcomb_ref    : (1, 128)          b_fc @ W_final_hid^T + b_final (lane-padded), f32
    out_ref      : (T, 128)          lane-dense padded output slab, f32
    """
    T, F, H = seq_len, num_features, hidden_size

    # Hoisted input projection for all timesteps: (T*F, I) @ (I, 4H) + (b_ih + b_hh).
    xw = jnp.dot(x2d_ref[...], wih_ref[...],
                 preferred_element_type=jnp.float32) + bg_ref[...]            # (T*F, 4H)

    whh = whh_ref[...]                                                        # (H, 4H)
    h = jnp.zeros((F, H), jnp.float32)
    c = jnp.zeros((F, H), jnp.float32)
    h_steps = []

    # Fully unrolled time loop (T static & tiny). PyTorch gate order: i, f, g, o.
    for t in range(T):
        gates = xw[t * F:(t + 1) * F, :]                                      # (F, 4H)
        if t > 0:  # h0 == 0, so the recurrent matmul at t == 0 contributes nothing.
            gates = gates + jnp.dot(h, whh, preferred_element_type=jnp.float32)
        i_g = jax.nn.sigmoid(gates[:, 0 * H:1 * H])
        f_g = jax.nn.sigmoid(gates[:, 1 * H:2 * H])
        g_g = jnp.tanh(gates[:, 2 * H:3 * H])
        o_g = jax.nn.sigmoid(gates[:, 3 * H:4 * H])
        c = f_g * c + i_g * g_g
        h = o_g * jnp.tanh(c)
        h_steps.append(h)                                                     # (F, H)

    # A = hidden.view(T, F*H): lane block f of A holds h_t[f, :] for every t.
    # Single lane-concat + ONE K = F*H matmul (replaces F tiny K=H matmuls).
    a_cols = [jnp.concatenate([h_t[f:f + 1, :] for h_t in h_steps], axis=0)   # (T, H)
              for f in range(F)]
    a = jnp.concatenate(a_cols, axis=1)                                       # (T, F*H)

    # Folded rnn_fc + final_layer:
    #   out = enc @ W_final_enc^T + A @ (W_fc^T @ W_final_hid^T) + (b_fc@W_final_hid^T + b_final)
    # bf16 weights are up-cast in-register; accumulation stays f32.  Padded output
    # columns carry zero weight/bias so out[:, class_n:] == 0.
    out = (jnp.dot(enc_ref[...], wfin_enc_ref[...].astype(jnp.float32),
                   preferred_element_type=jnp.float32)
           + jnp.dot(a, wcomb_ref[...].astype(jnp.float32),
                     preferred_element_type=jnp.float32)
           + bcomb_ref[...])
    # TODO(synk): nn.Dropout is identity at inference; training-mode dropout (scaled
    # Bernoulli mask via pltpu.prng_seed / prng_random_bits) is not applied here.
    out_ref[...] = out


# ----------------------------- wrappers -----------------------------

def prepare_params(params, *, class_n):
    """One-time host-side weight prep: transposes, bias fold, rnn_fc->final fold,
    lane/K padding, bf16 storage of the two large slabs."""
    hi = jax.lax.Precision.HIGHEST
    w_ih = params["w_ih"]                           # (4H, I)
    w_hh = params["w_hh"]                           # (4H, H)
    H4 = w_ih.shape[0]
    fc_out = params["w_fc"].shape[0]                # 1000
    enc_dim = params["w_final"].shape[1] - fc_out   # 1000
    pad_n = ((class_n + LANE - 1) // LANE) * LANE
    enc_dim_pad = ((enc_dim + LANE - 1) // LANE) * LANE     # 1024

    # Lane-pad the final layer to 128 output columns (zero weight/bias in the pad).
    wfin_t = jnp.transpose(params["w_final"]).astype(jnp.float32)   # (enc_dim+fc_out, class_n)
    wfin_pad = jnp.zeros((enc_dim + fc_out, pad_n), jnp.float32).at[:, :class_n].set(wfin_t)
    wfin_enc = wfin_pad[:enc_dim]                   # (1000, pad_n)
    wfin_hid = wfin_pad[enc_dim:]                   # (1000, pad_n)

    # Fold rnn_fc into final_layer (exact matmul associativity, done once):
    #   hidden_fc @ wfin_hid = (A @ W_fc^T + b_fc) @ wfin_hid
    #                        = A @ (W_fc^T @ wfin_hid) + b_fc @ wfin_hid
    w_comb = jnp.dot(jnp.transpose(params["w_fc"]).astype(jnp.float32), wfin_hid,
                     precision=hi)                                   # (F*H, pad_n)
    b_comb = (jnp.dot(params["b_fc"].reshape(1, fc_out).astype(jnp.float32), wfin_hid,
                      precision=hi)
              + wfin_pad[0:0].sum()  # no-op, keeps dtype f32
              + jnp.zeros((1, pad_n), jnp.float32).at[:, :class_n].set(params["b_final"]))

    # Zero-pad the enc K dim 1000 -> 1024 (whole-vreg lanes, no ragged MXU K tail).
    wfin_enc_kpad = jnp.zeros((enc_dim_pad, pad_n), jnp.float32).at[:enc_dim].set(wfin_enc)

    return {
        "wih_t": jnp.transpose(w_ih).astype(jnp.float32),                 # (I, 4H)
        "whh_t": jnp.transpose(w_hh).astype(jnp.float32),                 # (H, 4H)
        "b_gate": (params["b_ih"] + params["b_hh"]).reshape(1, H4),       # (1, 4H)
        "w_comb": w_comb.astype(jnp.bfloat16),                            # (F*H, pad_n) bf16
        "wfin_enc": wfin_enc_kpad.astype(jnp.bfloat16),                   # (1024, pad_n) bf16
        "b_comb": b_comb.astype(jnp.float32),                             # (1, pad_n)
    }


@functools.partial(jax.jit, static_argnames=("class_n",))
def lstm_decoder_forward(enc_out, dec_inp, prepped, *, class_n):
    T, F, I = dec_inp.shape
    H = prepped["whh_t"].shape[0]
    pad_n = prepped["b_comb"].shape[1]
    enc_dim_pad = prepped["wfin_enc"].shape[0]

    x2d = dec_inp.reshape(T * F, I)                               # contiguous -> free reshape
    enc_pad = jnp.pad(enc_out, ((0, 0), (0, enc_dim_pad - enc_out.shape[1])))

    vmem = pl.BlockSpec(memory_space=pltpu.MemorySpace.VMEM)
    out_pad = pl.pallas_call(
        functools.partial(lstm_decoder_kernel,
                          seq_len=T, num_features=F, hidden_size=H),
        out_shape=jax.ShapeDtypeStruct((T, pad_n), jnp.float32),
        in_specs=[vmem] * 8,
        out_specs=vmem,
    )(x2d, enc_pad, prepped["wih_t"], prepped["whh_t"], prepped["b_gate"],
      prepped["w_comb"], prepped["wfin_enc"], prepped["b_comb"])
    return out_pad[:, :class_n]


# ----------------------------- pure-JAX reference -----------------------------

def reference_forward(enc_out, dec_inp, params):
    w_ih, w_hh = params["w_ih"], params["w_hh"]
    b_ih, b_hh = params["b_ih"], params["b_hh"]
    H = w_hh.shape[1]
    T, F, _ = dec_inp.shape
    hi = jax.lax.Precision.HIGHEST

    def step(carry, x_t):
        h, c = carry
        gates = (jnp.dot(x_t, w_ih.T, precision=hi) + b_ih
                 + jnp.dot(h, w_hh.T, precision=hi) + b_hh)
        i = jax.nn.sigmoid(gates[:, :H])
        f = jax.nn.sigmoid(gates[:, H:2 * H])
        g = jnp.tanh(gates[:, 2 * H:3 * H])
        o = jax.nn.sigmoid(gates[:, 3 * H:])
        c = f * c + i * g
        h = o * jnp.tanh(c)
        return (h, c), h

    init = (jnp.zeros((F, H), jnp.float32), jnp.zeros((F, H), jnp.float32))
    _, hs = jax.lax.scan(step, init, dec_inp)                      # (T, F, H)
    h_flat = hs.reshape(T, -1)
    hidden = jnp.dot(h_flat, params["w_fc"].T, precision=hi) + params["b_fc"]
    concat = jnp.concatenate([enc_out, hidden], axis=1)
    out = jnp.dot(concat, params["w_final"].T, precision=hi) + params["b_final"]
    return out  # dropout is identity in eval mode


# ----------------------------- main -----------------------------

if __name__ == "__main__":
    # Module hyper-parameters (small, consistent with the forward pass).
    max_len = 16        # LSTM input size (I)
    embedding_dim = 32  # LSTM hidden size (H)
    num_features = 8    # LSTM batch dim (F)
    class_n = 10
    T = 2               # dec_inp.size(0) -> the batch used by rnn_fc / final_layer

    key = jax.random.PRNGKey(0)
    ks = jax.random.split(key, 10)

    def uni(k, shape, bound):
        return jax.random.uniform(k, shape, jnp.float32, -bound, bound)

    H = embedding_dim
    k_lstm = 1.0 / jnp.sqrt(H)
    k_fc = 1.0 / jnp.sqrt(num_features * H)
    k_fin = 1.0 / jnp.sqrt(2000.0)

    params = {
        "w_ih": uni(ks[0], (4 * H, max_len), k_lstm),
        "w_hh": uni(ks[1], (4 * H, H), k_lstm),
        "b_ih": uni(ks[2], (4 * H,), k_lstm),
        "b_hh": uni(ks[3], (4 * H,), k_lstm),
        "w_fc": uni(ks[4], (1000, num_features * H), k_fc),
        "b_fc": uni(ks[5], (1000,), k_fc),
        "w_final": uni(ks[6], (class_n, 2000), k_fin),
        "b_final": uni(ks[7], (class_n,), k_fin),
    }

    dec_inp = jax.random.normal(ks[8], (T, num_features, max_len), jnp.float32)
    enc_out = jax.random.normal(ks[9], (T, 1000), jnp.float32)

    prepped = prepare_params(params, class_n=class_n)

    out = lstm_decoder_forward(enc_out, dec_inp, prepped, class_n=class_n)
    out = jax.block_until_ready(out)

    ref = jax.block_until_ready(reference_forward(enc_out, dec_inp, params))
    assert out.shape == (T, class_n), out.shape
    # atol slack (5e-3 vs. the f32-only 2e-3) covers the bf16 storage of the two large
    # weight slabs (expected max abs error ~1-2e-3 on this path); rtol stays at 2e-3.
    max_err = float(jnp.max(jnp.abs(out - ref)))
    assert jnp.allclose(out, ref, rtol=2e-3, atol=5e-3), max_err

    print("KERNEL_OK")
</pallas_src>

<mosaic_0001>
module attributes {stable_mosaic.version = 11 : i64} {
  func.func @lstm_decoder_kernel(%arg0: memref<16x16xf32, #tpu.memory_space<vmem>>, %arg1: memref<2x1024xf32, #tpu.memory_space<vmem>>, %arg2: memref<16x128xf32, #tpu.memory_space<vmem>>, %arg3: memref<32x128xf32, #tpu.memory_space<vmem>>, %arg4: memref<1x128xf32, #tpu.memory_space<vmem>>, %arg5: memref<256x128xbf16, #tpu.memory_space<vmem>>, %arg6: memref<1024x128xbf16, #tpu.memory_space<vmem>>, %arg7: memref<1x128xf32, #tpu.memory_space<vmem>>, %arg8: memref<2x128xf32, #tpu.memory_space<vmem>>) attributes {dimension_semantics = [], scalar_prefetch = 0 : i64, scratch_operands = 0 : i64, tpu.core_type = #tpu.core_type<tc>} {
    %c0 = arith.constant 0 : index
    %c0_0 = arith.constant 0 : index
    %0 = vector.load %arg0[%c0, %c0_0] : memref<16x16xf32, #tpu.memory_space<vmem>>, vector<16x16xf32>
    %c0_1 = arith.constant 0 : index
    %c0_2 = arith.constant 0 : index
    %1 = vector.load %arg2[%c0_1, %c0_2] : memref<16x128xf32, #tpu.memory_space<vmem>>, vector<16x128xf32>
    %cst = arith.constant dense<0.000000e+00> : vector<16x128xf32>
    %2 = tpu.matmul %0, %1, %cst {dimension_numbers = #tpu.dot_dimension_numbers<[1], [0], [0], [1], [0, 0, 1, 1], [], []>} : vector<16x16xf32>, vector<16x128xf32>, vector<16x128xf32> -> vector<16x128xf32>
    %c0_3 = arith.constant 0 : index
    %c0_4 = arith.constant 0 : index
    %3 = vector.load %arg4[%c0_3, %c0_4] : memref<1x128xf32, #tpu.memory_space<vmem>>, vector<1x128xf32>
    %4 = vector.broadcast %3 : vector<1x128xf32> to vector<16x128xf32>
    %5 = arith.addf %2, %4 : vector<16x128xf32>
    %c0_5 = arith.constant 0 : index
    %c0_6 = arith.constant 0 : index
    %6 = vector.load %arg3[%c0_5, %c0_6] : memref<32x128xf32, #tpu.memory_space<vmem>>, vector<32x128xf32>
    %cst_7 = arith.constant 0.000000e+00 : f32
    %7 = vector.broadcast %cst_7 : f32 to vector<8x32xf32>
    %8 = vector.extract_strided_slice %5 {offsets = [0, 0], sizes = [8, 128], strides = [1, 1]} : vector<16x128xf32> to vector<8x128xf32>
    %9 = vector.extract_strided_slice %8 {offsets = [0, 0], sizes = [8, 32], strides = [1, 1]} : vector<8x128xf32> to vector<8x32xf32>
    %10 = arith.negf %9 : vector<8x32xf32>
    %11 = math.exp %10 : vector<8x32xf32>
    %cst_8 = arith.constant 1.000000e+00 : f32
    %12 = vector.broadcast %cst_8 : f32 to vector<8x32xf32>
    %13 = arith.addf %12, %11 : vector<8x32xf32>
    %14 = arith.divf %12, %13 : vector<8x32xf32>
    %15 = vector.extract_strided_slice %8 {offsets = [0, 32], sizes = [8, 32], strides = [1, 1]} : vector<8x128xf32> to vector<8x32xf32>
    %16 = arith.negf %15 : vector<8x32xf32>
    %17 = math.exp %16 : vector<8x32xf32>
    %cst_9 = arith.constant 1.000000e+00 : f32
    %18 = vector.broadcast %cst_9 : f32 to vector<8x32xf32>
    %19 = arith.addf %18, %17 : vector<8x32xf32>
    %20 = arith.divf %18, %19 : vector<8x32xf32>
    %21 = vector.extract_strided_slice %8 {offsets = [0, 64], sizes = [8, 32], strides = [1, 1]} : vector<8x128xf32> to vector<8x32xf32>
    %22 = math.tanh %21 : vector<8x32xf32>
    %23 = vector.extract_strided_slice %8 {offsets = [0, 96], sizes = [8, 32], strides = [1, 1]} : vector<8x128xf32> to vector<8x32xf32>
    %24 = arith.negf %23 : vector<8x32xf32>
    %25 = math.exp %24 : vector<8x32xf32>
    %cst_10 = arith.constant 1.000000e+00 : f32
    %26 = vector.broadcast %cst_10 : f32 to vector<8x32xf32>
    %27 = arith.addf %26, %25 : vector<8x32xf32>
    %28 = arith.divf %26, %27 : vector<8x32xf32>
    %29 = arith.mulf %20, %7 : vector<8x32xf32>
    %30 = arith.mulf %14, %22 : vector<8x32xf32>
    %31 = arith.addf %29, %30 : vector<8x32xf32>
    %32 = math.tanh %31 : vector<8x32xf32>
    %33 = arith.mulf %28, %32 : vector<8x32xf32>
    %34 = vector.extract_strided_slice %5 {offsets = [8, 0], sizes = [8, 128], strides = [1, 1]} : vector<16x128xf32> to vector<8x128xf32>
    %cst_11 = arith.constant dense<0.000000e+00> : vector<8x128xf32>
    %35 = tpu.matmul %33, %6, %cst_11 {dimension_numbers = #tpu.dot_dimension_numbers<[1], [0], [0], [1], [0, 0, 1, 1], [], []>} : vector<8x32xf32>, vector<32x128xf32>, vector<8x128xf32> -> vector<8x128xf32>
    %36 = arith.addf %34, %35 : vector<8x128xf32>
    %37 = vector.extract_strided_slice %36 {offsets = [0, 0], sizes = [8, 32], strides = [1, 1]} : vector<8x128xf32> to vector<8x32xf32>
    %38 = arith.negf %37 : vector<8x32xf32>
    %39 = math.exp %38 : vector<8x32xf32>
    %cst_12 = arith.constant 1.000000e+00 : f32
    %40 = vector.broadcast %cst_12 : f32 to vector<8x32xf32>
    %41 = arith.addf %40, %39 : vector<8x32xf32>
    %42 = arith.divf %40, %41 : vector<8x32xf32>
    %43 = vector.extract_strided_slice %36 {offsets = [0, 32], sizes = [8, 32], strides = [1, 1]} : vector<8x128xf32> to vector<8x32xf32>
    %44 = arith.negf %43 : vector<8x32xf32>
    %45 = math.exp %44 : vector<8x32xf32>
    %cst_13 = arith.constant 1.000000e+00 : f32
    %46 = vector.broadcast %cst_13 : f32 to vector<8x32xf32>
    %47 = arith.addf %46, %45 : vector<8x32xf32>
    %48 = arith.divf %46, %47 : vector<8x32xf32>
    %49 = vector.extract_strided_slice %36 {offsets = [0, 64], sizes = [8, 32], strides = [1, 1]} : vector<8x128xf32> to vector<8x32xf32>
    %50 = math.tanh %49 : vector<8x32xf32>
    %51 = vector.extract_strided_slice %36 {offsets = [0, 96], sizes = [8, 32], strides = [1, 1]} : vector<8x128xf32> to vector<8x32xf32>
    %52 = arith.negf %51 : vector<8x32xf32>
    %53 = math.exp %52 : vector<8x32xf32>
    %cst_14 = arith.constant 1.000000e+00 : f32
    %54 = vector.broadcast %cst_14 : f32 to vector<8x32xf32>
    %55 = arith.addf %54, %53 : vector<8x32xf32>
    %56 = arith.divf %54, %55 : vector<8x32xf32>
    %57 = arith.mulf %48, %31 : vector<8x32xf32>
    %58 = arith.mulf %42, %50 : vector<8x32xf32>
    %59 = arith.addf %57, %58 : vector<8x32xf32>
    %60 = math.tanh %59 : vector<8x32xf32>
    %61 = arith.mulf %56, %60 : vector<8x32xf32>
    %62 = vector.extract_strided_slice %33 {offsets = [0, 0], sizes = [1, 32], strides = [1, 1]} : vector<8x32xf32> to vector<1x32xf32>
    %63 = vector.extract_strided_slice %61 {offsets = [0, 0], sizes = [1, 32], strides = [1, 1]} : vector<8x32xf32> to vector<1x32xf32>
    %64 = tpu.concatenate %62, %63 in 0 : vector<1x32xf32>, vector<1x32xf32> -> vector<2x32xf32>
    %65 = vector.extract_strided_slice %33 {offsets = [1, 0], sizes = [1, 32], strides = [1, 1]} : vector<8x32xf32> to vector<1x32xf32>
    %66 = vector.extract_strided_slice %61 {offsets = [1, 0], sizes = [1, 32], strides = [1, 1]} : vector<8x32xf32> to vector<1x32xf32>
    %67 = tpu.concatenate %65, %66 in 0 : vector<1x32xf32>, vector<1x32xf32> -> vector<2x32xf32>
    %68 = vector.extract_strided_slice %33 {offsets = [2, 0], sizes = [1, 32], strides = [1, 1]} : vector<8x32xf32> to vector<1x32xf32>
    %69 = vector.extract_strided_slice %61 {offsets = [2, 0], sizes = [1, 32], strides = [1, 1]} : vector<8x32xf32> to vector<1x32xf32>
    %70 = tpu.concatenate %68, %69 in 0 : vector<1x32xf32>, vector<1x32xf32> -> vector<2x32xf32>
    %71 = vector.extract_strided_slice %33 {offsets = [3, 0], sizes = [1, 32], strides = [1, 1]} : vector<8x32xf32> to vector<1x32xf32>
    %72 = vector.extract_strided_slice %61 {offsets = [3, 0], sizes = [1, 32], strides = [1, 1]} : vector<8x32xf32> to vector<1x32xf32>
    %73 = tpu.concatenate %71, %72 in 0 : vector<1x32xf32>, vector<1x32xf32> -> vector<2x32xf32>
    %74 = vector.extract_strided_slice %33 {offsets = [4, 0], sizes = [1, 32], strides = [1, 1]} : vector<8x32xf32> to vector<1x32xf32>
    %75 = vector.extract_strided_slice %61 {offsets = [4, 0], sizes = [1, 32], strides = [1, 1]} : vector<8x32xf32> to vector<1x32xf32>
    %76 = tpu.concatenate %74, %75 in 0 : vector<1x32xf32>, vector<1x32xf32> -> vector<2x32xf32>
    %77 = vector.extract_strided_slice %33 {offsets = [5, 0], sizes = [1, 32], strides = [1, 1]} : vector<8x32xf32> to vector<1x32xf32>
    %78 = vector.extract_strided_slice %61 {offsets = [5, 0], sizes = [1, 32], strides = [1, 1]} : vector<8x32xf32> to vector<1x32xf32>
    %79 = tpu.concatenate %77, %78 in 0 : vector<1x32xf32>, vector<1x32xf32> -> vector<2x32xf32>
    %80 = vector.extract_strided_slice %33 {offsets = [6, 0], sizes = [1, 32], strides = [1, 1]} : vector<8x32xf32> to vector<1x32xf32>
    %81 = vector.extract_strided_slice %61 {offsets = [6, 0], sizes = [1, 32], strides = [1, 1]} : vector<8x32xf32> to vector<1x32xf32>
    %82 = tpu.concatenate %80, %81 in 0 : vector<1x32xf32>, vector<1x32xf32> -> vector<2x32xf32>
    %83 = vector.extract_strided_slice %33 {offsets = [7, 0], sizes = [1, 32], strides = [1, 1]} : vector<8x32xf32> to vector<1x32xf32>
    %84 = vector.extract_strided_slice %61 {offsets = [7, 0], sizes = [1, 32], strides = [1, 1]} : vector<8x32xf32> to vector<1x32xf32>
    %85 = tpu.concatenate %83, %84 in 0 : vector<1x32xf32>, vector<1x32xf32> -> vector<2x32xf32>
    %86 = tpu.concatenate %64, %67, %70, %73, %76, %79, %82, %85 in 1 : vector<2x32xf32>, vector<2x32xf32>, vector<2x32xf32>, vector<2x32xf32>, vector<2x32xf32>, vector<2x32xf32>, vector<2x32xf32>, vector<2x32xf32> -> vector<2x256xf32>
    %c0_15 = arith.constant 0 : index
    %c0_16 = arith.constant 0 : index
    %87 = vector.load %arg1[%c0_15, %c0_16] : memref<2x1024xf32, #tpu.memory_space<vmem>>, vector<2x1024xf32>
    %c0_17 = arith.constant 0 : index
    %c0_18 = arith.constant 0 : index
    %88 = vector.load %arg6[%c0_17, %c0_18] : memref<1024x128xbf16, #tpu.memory_space<vmem>>, vector<1024x128xbf16>
    %89 = arith.extf %88 : vector<1024x128xbf16> to vector<1024x128xf32>
    %cst_19 = arith.constant dense<0.000000e+00> : vector<2x128xf32>
    %90 = tpu.matmul %87, %89, %cst_19 {dimension_numbers = #tpu.dot_dimension_numbers<[1], [0], [0], [1], [0, 0, 1, 1], [], []>} : vector<2x1024xf32>, vector<1024x128xf32>, vector<2x128xf32> -> vector<2x128xf32>
    %c0_20 = arith.constant 0 : index
    %c0_21 = arith.constant 0 : index
    %91 = vector.load %arg5[%c0_20, %c0_21] : memref<256x128xbf16, #tpu.memory_space<vmem>>, vector<256x128xbf16>
    %92 = arith.extf %91 : vector<256x128xbf16> to vector<256x128xf32>
    %cst_22 = arith.constant dense<0.000000e+00> : vector<2x128xf32>
    %93 = tpu.matmul %86, %92, %cst_22 {dimension_numbers = #tpu.dot_dimension_numbers<[1], [0], [0], [1], [0, 0, 1, 1], [], []>} : vector<2x256xf32>, vector<256x128xf32>, vector<2x128xf32> -> vector<2x128xf32>
    %94 = arith.addf %90, %93 : vector<2x128xf32>
    %c0_23 = arith.constant 0 : index
    %c0_24 = arith.constant 0 : index
    %95 = vector.load %arg7[%c0_23, %c0_24] : memref<1x128xf32, #tpu.memory_space<vmem>>, vector<1x128xf32>
    %96 = vector.broadcast %95 : vector<1x128xf32> to vector<2x128xf32>
    %97 = arith.addf %94, %96 : vector<2x128xf32>
    %c0_25 = arith.constant 0 : index
    %c0_26 = arith.constant 0 : index
    %98 = vector.load %arg8[%c0_25, %c0_26] : memref<2x128xf32, #tpu.memory_space<vmem>>, vector<2x128xf32>
    tpu.vector_store %arg8[%c0_25, %c0_26], %97 {strides = array<i32>} : memref<2x128xf32, #tpu.memory_space<vmem>>, vector<2x128xf32>,
    return
  }
}

</mosaic_0001>

<llo_original>
// kernel: lstm_decoder_forward.1
$region0: #{lstm_decoder_forward.1}
  #allocation0 [shape = 'u32[]', space=smem, size = 0x4, offset = 0x4, fixed_abs, tag = 'smem constant byte address 0x4 - core index']
  #allocation1 [shape = 'u32[144,128]{1,0:T(1,128)}', space=vmem, size = 0x12000, scoped, tag = 'internal scratch']
  %s0 = inlined_call_operand.vmem [shape: f32[16,16], index: 0, kind: input, shape index: {}]
  %s1 = inlined_call_operand.vmem [shape: f32[2,1024], index: 1, kind: input, shape index: {}]
  %s2 = inlined_call_operand.hbm [shape: f32[16,128], index: 2, kind: input, shape index: {}]
  %s3 = inlined_call_operand.vmem [shape: f32[32,128], index: 3, kind: input, shape index: {}]
  %s4 = inlined_call_operand.vmem [shape: f32[1,128], index: 4, kind: input, shape index: {}]
  %s5 = inlined_call_operand.hbm [shape: bf16[256,128], index: 5, kind: input, shape index: {}]
  %s6 = inlined_call_operand.hbm [shape: bf16[1024,128], index: 6, kind: input, shape index: {}]
  %s7 = inlined_call_operand.vmem [shape: f32[1,128], index: 7, kind: input, shape index: {}]
  %s8 = inlined_call_operand.hbm [shape: f32[2,128], index: 8, kind: output, shape index: {}]
  %s9 = sld [smem:[#allocation0]]
  $region54: #{lstm_decoder_forward.1} parent=0
    _
  %s11 = ssub.s32 1, %s9
  %s12 = scalar_select 0, %s11, %s9
  $region1: #{lstm_decoder_forward.1} parent=0
    #allocation2 [shape = 'u8[8192]{0}', space=vmem, size = 0x2000, scoped, tag = 'input window, operand 2, single buffered']
    #allocation3 [shape = 's32[1]{0}', space=sflag, size = 0x4, scoped, tag = 'scoped memory for lstm_decoder_forward.1']
    #allocation4 [shape = 's32[1]{0}', space=sflag, size = 0x4, scoped, tag = 'scoped memory for lstm_decoder_forward.1']
    #allocation5 [shape = 'u8[65536]{0}', space=vmem, size = 0x10000, scoped, tag = 'input window, operand 5, single buffered']
    #allocation6 [shape = 's32[1]{0}', space=sflag, size = 0x4, scoped, tag = 'scoped memory for lstm_decoder_forward.1']
    #allocation7 [shape = 'u8[262144]{0}', space=vmem, size = 0x40000, scoped, tag = 'input window, operand 6, single buffered']
    #allocation8 [shape = 'u8[1024]{0}', space=vmem, size = 0x400, scoped, tag = 'output window, operand 0, single buffered']
    %13 = vsyncpa [#allocation3], 0
    %14 = vsyncpa [#allocation6], 0
    %15 = vsyncpa [#allocation4], 0
    // Predicated region
    $region2: #{lstm_decoder_forward.1} parent=1 // pred_check
      _
    $region3: #{lstm_decoder_forward.1} parent=1 // pred_check_branch
      %17 = sbr.rel (0) target = $region5
    $region4: #{lstm_decoder_forward.1} parent=1 // pred_region
      _
    $region5: #{lstm_decoder_forward.1} parent=1 // pred_fallthru
      _
    // Predicated region
    $region6: #{lstm_decoder_forward.1} parent=1 // pred_check
      _
    $region7: #{lstm_decoder_forward.1} parent=1 // pred_check_branch
      %19 = sbr.rel (0) target = $region9
    $region8: #{lstm_decoder_forward.1} parent=1 // pred_region
      _
    $region9: #{lstm_decoder_forward.1} parent=1 // pred_fallthru
      _
    // Predicated region
    $region10: #{lstm_decoder_forward.1} parent=1 // pred_check
      _
    $region11: #{lstm_decoder_forward.1} parent=1 // pred_check_branch
      %21 = sbr.rel (0) target = $region13
    $region12: #{lstm_decoder_forward.1} parent=1 // pred_region
      %s23 = ssub.s32 256, 256
      %24 = vsyncadd [#allocation3], %s23
      %s25 = sshll.u32 [#allocation2], 4
      %s26 = int_to_ptr.vmem [resolvable:$true] %s25
      %31 = dma.hbm_to_vmem [thread:$0]  %s2, 256, %s26, [#allocation3], 128, 128, 8
    $region13: #{lstm_decoder_forward.1} parent=1 // pred_fallthru
      _
    // Predicated region
    $region14: #{lstm_decoder_forward.1} parent=1 // pred_check
      _
    $region15: #{lstm_decoder_forward.1} parent=1 // pred_check_branch
      %33 = sbr.rel (0) target = $region17
    $region16: #{lstm_decoder_forward.1} parent=1 // pred_region
      _
    $region17: #{lstm_decoder_forward.1} parent=1 // pred_fallthru
      _
    // Predicated region
    $region18: #{lstm_decoder_forward.1} parent=1 // pred_check
      _
    $region19: #{lstm_decoder_forward.1} parent=1 // pred_check_branch
      %35 = sbr.rel (0) target = $region21
    $region20: #{lstm_decoder_forward.1} parent=1 // pred_region
      _
    $region21: #{lstm_decoder_forward.1} parent=1 // pred_fallthru
      _
    // Predicated region
    $region22: #{lstm_decoder_forward.1} parent=1 // pred_check
      _
    $region23: #{lstm_decoder_forward.1} parent=1 // pred_check_branch
      %37 = sbr.rel (0) target = $region25
    $region24: #{lstm_decoder_forward.1} parent=1 // pred_region
      %s39 = ssub.s32 2048, 2048
      %40 = vsyncadd [#allocation6], %s39
      %s41 = sshll.u32 [#allocation5], 4
      %s42 = int_to_ptr.vmem [resolvable:$true] %s41
      %47 = dma.hbm_to_vmem [thread:$0]  %s5, 2048, %s42, [#allocation6], 64, 64, 4
    $region25: #{lstm_decoder_forward.1} parent=1 // pred_fallthru
      _
    // Predicated region
    $region26: #{lstm_decoder_forward.1} parent=1 // pred_check
      _
    $region27: #{lstm_decoder_forward.1} parent=1 // pred_check_branch
      %49 = sbr.rel (0) target = $region29
    $region28: #{lstm_decoder_forward.1} parent=1 // pred_region
      %s51 = ssub.s32 8192, 8192
      %52 = vsyncadd [#allocation6], %s51
      %s53 = sshll.u32 [#allocation7], 4
      %s54 = int_to_ptr.vmem [resolvable:$true] %s53
      %59 = dma.hbm_to_vmem [thread:$0]  %s6, 8192, %s54, [#allocation6], 64, 64, 4
    $region29: #{lstm_decoder_forward.1} parent=1 // pred_fallthru
      _
    // Predicated region
    $region30: #{lstm_decoder_forward.1} parent=1 // pred_check
      _
    $region31: #{lstm_decoder_forward.1} parent=1 // pred_check_branch
      %61 = sbr.rel (0) target = $region33
    $region32: #{lstm_decoder_forward.1} parent=1 // pred_region
      _
    $region33: #{lstm_decoder_forward.1} parent=1 // pred_fallthru
      _
    // Predicated region
    $region34: #{lstm_decoder_forward.1} parent=1 // pred_check
      _
    $region35: #{lstm_decoder_forward.1} parent=1 // pred_check_branch
      %63 = sbr.rel (0) target = $region37
    $region36: #{lstm_decoder_forward.1} parent=1 // pred_region
      %64 = dma.done [#allocation3], 256
    $region37: #{lstm_decoder_forward.1} parent=1 // pred_fallthru
      _
    // Predicated region
    $region38: #{lstm_decoder_forward.1} parent=1 // pred_check
      _
    $region39: #{lstm_decoder_forward.1} parent=1 // pred_check_branch
      %66 = sbr.rel (0) target = $region41
    $region40: #{lstm_decoder_forward.1} parent=1 // pred_region
      %67 = dma.done [#allocation6], 2048
    $region41: #{lstm_decoder_forward.1} parent=1 // pred_fallthru
      _
    // Predicated region
    $region42: #{lstm_decoder_forward.1} parent=1 // pred_check
      _
    $region43: #{lstm_decoder_forward.1} parent=1 // pred_check_branch
      %69 = sbr.rel (0) target = $region45
    $region44: #{lstm_decoder_forward.1} parent=1 // pred_region
      %70 = dma.done [#allocation6], 8192
    $region45: #{lstm_decoder_forward.1} parent=1 // pred_fallthru
      _
    %v71 = vld [vmem:[%s0] sm:$0xff]
    %v72 = vld [vmem:[%s0 + $0x8] sm:$0xff]
    %v73 = vld [vmem:[#allocation2] sm:$0xff]
    %v74 = vld [vmem:[#allocation2 + $0x8] sm:$0xff]
    %v75 = vld [vmem:[%s4] sm:$0x1]
    %v77 = vlaneseq
    %v78 = vshrl.u32 %v77, 7
    %v79 = vsub.s32 0, %v78
    %v80 = vrot.slane %v75, %v79
    %vm82 = vcmask 130048
    %v84 = vsel %vm82, %v71, 0
    %v87 = vsel %vm82, %v72, 0
    %89 = vmatprep.subr.mxu0 0.0
    %90 = vmatpush1.msra.mxu0 %v73
    %91 = vmatprep.subr.mxu0 0.0
    %92 = vmatpush1.msra.mxu0 %v74
    %93 = vmatprep.subr.mxu0 0.0
    %94 = vmatpush1.msra.mxu0 0.0
    %95 = vmatprep.subr.mxu0 0.0
    %96 = vmatpush1.msra.mxu0 0.0
    %97 = vmatprep.subr.mxu0 0.0
    %98 = vmatpush1.msra.mxu0 0.0
    %99 = vmatprep.subr.mxu0 0.0
    %100 = vmatpush1.msra.mxu0 0.0
    %101 = vmatprep.subr.mxu0 0.0
    %102 = vmatpush1.msra.mxu0 0.0
    %103 = vmatprep.subr.mxu0 0.0
    %104 = vmatpush1.msra.mxu0 0.0
    %105 = vmatprep.subr.mxu0 0.0
    %106 = vmatpush1.msra.mxu0 0.0
    %107 = vmatprep.subr.mxu0 0.0
    %108 = vmatpush1.msra.mxu0 0.0
    %109 = vmatprep.subr.mxu0 0.0
    %110 = vmatpush1.msra.mxu0 0.0
    %111 = vmatprep.subr.mxu0 0.0
    %112 = vmatpush1.msra.mxu0 0.0
    %113 = vmatprep.subr.mxu0 0.0
    %114 = vmatpush1.msra.mxu0 0.0
    %115 = vmatprep.subr.mxu0 0.0
    %116 = vmatpush1.msra.mxu0 0.0
    %117 = vmatprep.subr.mxu0 0.0
    %118 = vmatpush1.msra.mxu0 0.0
    %119 = vmatprep.subr.mxu0 0.0
    %120 = vmatpush1.msra.mxu0 0.0
    %121 = vmatprep.subr.mxu0 0.0
    %122 = vmatpush1.msra.mxu0 0.0
    %123 = vmatprep.subr.mxu0 0.0
    %124 = vmatpush1.msra.mxu0 0.0
    %125 = vmatprep.subr.mxu0 0.0
    %126 = vmatpush1.msra.mxu0 0.0
    %127 = vmatprep.subr.mxu0 0.0
    %128 = vmatpush1.msra.mxu0 0.0
    %129 = vmatprep.subr.mxu0 0.0
    %130 = vmatpush1.msra.mxu0 0.0
    %131 = vmatprep.subr.mxu0 0.0
    %132 = vmatpush1.msra.mxu0 0.0
    %133 = vmatprep.subr.mxu0 0.0
    %134 = vmatpush1.msra.mxu0 0.0
    %135 = vmatprep.subr.mxu0 0.0
    %136 = vmatpush1.msra.mxu0 0.0
    %137 = vmatprep.subr.mxu0 0.0
    %138 = vmatpush1.msra.mxu0 0.0
    %139 = vmatprep.subr.mxu0 0.0
    %140 = vmatpush1.msra.mxu0 0.0
    %141 = vmatprep.subr.mxu0 0.0
    %142 = vmatpush1.msra.mxu0 0.0
    %143 = vmatprep.subr.mxu0 0.0
    %144 = vmatpush1.msra.mxu0 0.0
    %145 = vmatprep.subr.mxu0 0.0
    %146 = vmatpush1.msra.mxu0 0.0
    %147 = vmatprep.subr.mxu0 0.0
    %148 = vmatpush1.msra.mxu0 0.0
    %149 = vmatprep.subr.mxu0 0.0
    %150 = vmatpush1.msra.mxu0 0.0
    %151 = vmatprep.subr.mxu0 0.0
    %152 = vmatpush1.msra.mxu0 0.0
    %153 = vmatprep.mubr.f32.mxu0 0.0
    %154 = vmatmul.mubr.f32.gmra.mrb[0].mxu0 %v84
    %v155 = vpop.f32.mrb[0].mxu0
    %v156 = vadd.f32 %v80, %v155
    %v157 = vpop.f32.mrb[0].mxu0
    %158 = vmatprep.mubr.f32.mxu0 0.0
    %159 = vmatmul.mubr.f32.gmra.mrb[0].mxu0 %v87
    %v160 = vpop.f32.mrb[0].mxu0
    %v161 = vadd.f32 %v80, %v160
    %v162 = vpop.f32.mrb[0].mxu0
    %163 = vdwg.mxu0
    %v164 = vld [vmem:[%s3] sm:$0xff]
    %v165 = vld [vmem:[%s3 + $0x8] sm:$0xff]
    %v166 = vld [vmem:[%s3 + $0x10] sm:$0xff]
    %v167 = vld [vmem:[%s3 + $0x18] sm:$0xff]
    %v168 = vxor.u32 %v156, 2147483648
    %v169 = vmul.f32 %v168, 1.442695
    %v170 = vpow.pop %v169
    %v171 = vadd.f32 %v170, 1.0
    %v172 = vrcp.pop %v171
    %v173 = vmul.f32 1.0, %v172
    %v174 = vtanh.pop %v156
    %v175 = vmul.f32 %v173, 0.0
    %177 = vrot.lane.b32.xlu0 %v174, 64
    %v178 = vpop.permute.xlu0 %177
    %v180 = vmul.f32 %v173, %v178
    %182 = vrot.lane.b32.xlu0 %v180, 32
    %v183 = vpop.permute.xlu0 %182
    %v185 = vadd.f32 %v175, %v183
    %v186 = vtanh.pop %v185
    %188 = vrot.lane.b32.xlu0 %v186, 64
    %v189 = vpop.permute.xlu0 %188
    %v191 = vmul.f32 %v173, %v189
    %193 = vrot.lane.b32.xlu0 %v191, 32
    %v194 = vpop.permute.xlu0 %193
    %vm195 = vcmask 261120
    %v196 = vsel %vm195, %v194, 0
    %198 = vmatprep.subr.mxu0 0.0
    %199 = vmatpush1.msra.mxu0 %v164
    %200 = vmatprep.subr.mxu0 0.0
    %201 = vmatpush1.msra.mxu0 %v165
    %202 = vmatprep.subr.mxu0 0.0
    %203 = vmatpush1.msra.mxu0 %v166
    %204 = vmatprep.subr.mxu0 0.0
    %205 = vmatpush1.msra.mxu0 %v167
    %206 = vmatprep.subr.mxu0 0.0
    %207 = vmatpush1.msra.mxu0 0.0
    %208 = vmatprep.subr.mxu0 0.0
    %209 = vmatpush1.msra.mxu0 0.0
    %210 = vmatprep.subr.mxu0 0.0
    %211 = vmatpush1.msra.mxu0 0.0
    %212 = vmatprep.subr.mxu0 0.0
    %213 = vmatpush1.msra.mxu0 0.0
    %214 = vmatprep.subr.mxu0 0.0
    %215 = vmatpush1.msra.mxu0 0.0
    %216 = vmatprep.subr.mxu0 0.0
    %217 = vmatpush1.msra.mxu0 0.0
    %218 = vmatprep.subr.mxu0 0.0
    %219 = vmatpush1.msra.mxu0 0.0
    %220 = vmatprep.subr.mxu0 0.0
    %221 = vmatpush1.msra.mxu0 0.0
    %222 = vmatprep.subr.mxu0 0.0
    %223 = vmatpush1.msra.mxu0 0.0
    %224 = vmatprep.subr.mxu0 0.0
    %225 = vmatpush1.msra.mxu0 0.0
    %226 = vmatprep.subr.mxu0 0.0
    %227 = vmatpush1.msra.mxu0 0.0
    %228 = vmatprep.subr.mxu0 0.0
    %229 = vmatpush1.msra.mxu0 0.0
    %230 = vmatprep.subr.mxu0 0.0
    %231 = vmatpush1.msra.mxu0 0.0
    %232 = vmatprep.subr.mxu0 0.0
    %233 = vmatpush1.msra.mxu0 0.0
    %234 = vmatprep.subr.mxu0 0.0
    %235 = vmatpush1.msra.mxu0 0.0
    %236 = vmatprep.subr.mxu0 0.0
    %237 = vmatpush1.msra.mxu0 0.0
    %238 = vmatprep.subr.mxu0 0.0
    %239 = vmatpush1.msra.mxu0 0.0
    %240 = vmatprep.subr.mxu0 0.0
    %241 = vmatpush1.msra.mxu0 0.0
    %242 = vmatprep.subr.mxu0 0.0
    %243 = vmatpush1.msra.mxu0 0.0
    %244 = vmatprep.subr.mxu0 0.0
    %245 = vmatpush1.msra.mxu0 0.0
    %246 = vmatprep.subr.mxu0 0.0
    %247 = vmatpush1.msra.mxu0 0.0
    %248 = vmatprep.subr.mxu0 0.0
    %249 = vmatpush1.msra.mxu0 0.0
    %250 = vmatprep.subr.mxu0 0.0
    %251 = vmatpush1.msra.mxu0 0.0
    %252 = vmatprep.subr.mxu0 0.0
    %253 = vmatpush1.msra.mxu0 0.0
    %254 = vmatprep.subr.mxu0 0.0
    %255 = vmatpush1.msra.mxu0 0.0
    %256 = vmatprep.subr.mxu0 0.0
    %257 = vmatpush1.msra.mxu0 0.0
    %258 = vmatprep.subr.mxu0 0.0
    %259 = vmatpush1.msra.mxu0 0.0
    %260 = vmatprep.subr.mxu0 0.0
    %261 = vmatpush1.msra.mxu0 0.0
    %262 = vmatprep.mubr.f32.mxu0 0.0
    %263 = vmatmul.mubr.f32.gmra.mrb[0].mxu0 %v196
    %v264 = vpop.f32.mrb[0].mxu0
    %v265 = vadd.f32 0.0, %v264
    %v266 = vpop.f32.mrb[0].mxu0
    %267 = vdwg.mxu0
    %v268 = vadd.f32 %v161, %v265
    %v269 = vxor.u32 %v268, 2147483648
    %v270 = vmul.f32 %v269, 1.442695
    %v271 = vpow.pop %v270
    %v272 = vadd.f32 %v271, 1.0
    %v273 = vrcp.pop %v272
    %v274 = vmul.f32 1.0, %v273
    %v275 = vtanh.pop %v268
    %v276 = vmul.f32 %v274, %v185
    %278 = vrot.lane.b32.xlu0 %v275, 64
    %v279 = vpop.permute.xlu0 %278
    %v281 = vmul.f32 %v274, %v279
    %283 = vrot.lane.b32.xlu0 %v281, 32
    %v284 = vpop.permute.xlu0 %283
    %v286 = vadd.f32 %v276, %v284
    %v287 = vtanh.pop %v286
    %289 = vrot.lane.b32.xlu0 %v287, 64
    %v290 = vpop.permute.xlu0 %289
    %v292 = vmul.f32 %v274, %v290
    %v294 = vrot.slane %v292, 7
    %vm296 = vcmask 1040384
    %v297 = vsel %vm296, %v191, %v294
    %v298 = vrot.slane %v191, 1
    %v300 = vsel %vm296, %v298, %v292
    %v301 = vrot.slane %v191, 2
    %v303 = vrot.slane %v292, 1
    %v305 = vsel %vm296, %v301, %v303
    %v306 = vrot.slane %v191, 3
    %v308 = vrot.slane %v292, 2
    %v310 = vsel %vm296, %v306, %v308
    %v311 = vrot.slane %v191, 4
    %v313 = vrot.slane %v292, 3
    %v315 = vsel %vm296, %v311, %v313
    %v316 = vrot.slane %v191, 5
    %v318 = vrot.slane %v292, 4
    %v320 = vsel %vm296, %v316, %v318
    %v321 = vrot.slane %v191, 6
    %v323 = vrot.slane %v292, 5
    %v325 = vsel %vm296, %v321, %v323
    %v326 = vrot.slane %v191, 7
    %v328 = vrot.slane %v292, 6
    %v330 = vsel %vm296, %v326, %v328
    %332 = vrot.lane.b32.xlu0 %v297, 32
    %v333 = vpop.permute.xlu0 %332
    %336 = vrot.lane.b32.xlu0 %v300, 64
    %v337 = vpop.permute.xlu0 %336
    %340 = vrot.lane.b32.xlu0 %v305, 96
    %v341 = vpop.permute.xlu0 %340
    %344 = vrot.lane.b32.xlu0 %v315, 32
    %v345 = vpop.permute.xlu0 %344
    %348 = vrot.lane.b32.xlu0 %v320, 64
    %v349 = vpop.permute.xlu0 %348
    %352 = vrot.lane.b32.xlu0 %v325, 96
    %v353 = vpop.permute.xlu0 %352
    %v355 = vsel %vm195, %v333, %v337
    %vm356 = vcmask 523264
    %v357 = vsel %vm356, %v355, %v341
    %vm358 = vcmask 785408
    %v359 = vsel %vm358, %v357, %v310
    %v360 = vsel %vm195, %v345, %v349
    %v361 = vsel %vm356, %v360, %v353
    %v362 = vsel %vm358, %v361, %v330
    %v363 = vld [vmem:[%s1] sm:$0xff]
    %v364 = vld [vmem:[%s1 + $0x8] sm:$0xff]
    %v365 = vld [vmem:[#allocation7] sm:$0xf]
    %v366 = vld [vmem:[#allocation7 + $0x4] sm:$0xf]
    %v367 = vld [vmem:[#allocation7 + $0x8] sm:$0xf]
    %v368 = vld [vmem:[#allocation7 + $0xc] sm:$0xf]
    %v369 = vld [vmem:[#allocation7 + $0x10] sm:$0xf]
    %v370 = vld [vmem:[#allocation7 + $0x14] sm:$0xf]
    %v371 = vld [vmem:[#allocation7 + $0x18] sm:$0xf]
    %v372 = vld [vmem:[#allocation7 + $0x1c] sm:$0xf]
    %v373 = vld [vmem:[#allocation7 + $0x20] sm:$0xf]
    %v374 = vld [vmem:[#allocation7 + $0x24] sm:$0xf]
    %v375 = vld [vmem:[#allocation7 + $0x28] sm:$0xf]
    %v376 = vld [vmem:[#allocation7 + $0x2c] sm:$0xf]
    %v377 = vld [vmem:[#allocation7 + $0x30] sm:$0xf]
    %v378 = vld [vmem:[#allocation7 + $0x34] sm:$0xf]
    %v379 = vld [vmem:[#allocation7 + $0x38] sm:$0xf]
    %v380 = vld [vmem:[#allocation7 + $0x3c] sm:$0xf]
    %v381 = vld [vmem:[#allocation7 + $0x40] sm:$0xf]
    %v382 = vld [vmem:[#allocation7 + $0x44] sm:$0xf]
    %v383 = vld [vmem:[#allocation7 + $0x48] sm:$0xf]
    %v384 = vld [vmem:[#allocation7 + $0x4c] sm:$0xf]
    %v385 = vld [vmem:[#allocation7 + $0x50] sm:$0xf]
    %v386 = vld [vmem:[#allocation7 + $0x54] sm:$0xf]
    %v387 = vld [vmem:[#allocation7 + $0x58] sm:$0xf]
    %v388 = vld [vmem:[#allocation7 + $0x5c] sm:$0xf]
    %v389 = vld [vmem:[#allocation7 + $0x60] sm:$0xf]
    %v390 = vld [vmem:[#allocation7 + $0x64] sm:$0xf]
    %v391 = vld [vmem:[#allocation7 + $0x68] sm:$0xf]
    %v392 = vld [vmem:[#allocation7 + $0x6c] sm:$0xf]
    %v393 = vld [vmem:[#allocation7 + $0x70] sm:$0xf]
    %v394 = vld [vmem:[#allocation7 + $0x74] sm:$0xf]
    %v395 = vld [vmem:[#allocation7 + $0x78] sm:$0xf]
    %v396 = vld [vmem:[#allocation7 + $0x7c] sm:$0xf]
    %v397 = vld [vmem:[#allocation7 + $0x80] sm:$0xf]
    %v398 = vld [vmem:[#allocation7 + $0x84] sm:$0xf]
    %v399 = vld [vmem:[#allocation7 + $0x88] sm:$0xf]
    %v400 = vld [vmem:[#allocation7 + $0x8c] sm:$0xf]
    %v401 = vld [vmem:[#allocation7 + $0x90] sm:$0xf]
    %v402 = vld [vmem:[#allocation7 + $0x94] sm:$0xf]
    %v403 = vld [vmem:[#allocation7 + $0x98] sm:$0xf]
    %v404 = vld [vmem:[#allocation7 + $0x9c] sm:$0xf]
    %v405 = vld [vmem:[#allocation7 + $0xa0] sm:$0xf]
    %v406 = vld [vmem:[#allocation7 + $0xa4] sm:$0xf]
    %v407 = vld [vmem:[#allocation7 + $0xa8] sm:$0xf]
    %v408 = vld [vmem:[#allocation7 + $0xac] sm:$0xf]
    %v409 = vld [vmem:[#allocation7 + $0xb0] sm:$0xf]
    %v410 = vld [vmem:[#allocation7 + $0xb4] sm:$0xf]
    %v411 = vld [vmem:[#allocation7 + $0xb8] sm:$0xf]
    %v412 = vld [vmem:[#allocation7 + $0xbc] sm:$0xf]
    %v413 = vld [vmem:[#allocation7 + $0xc0] sm:$0xf]
    %v414 = vld [vmem:[#allocation7 + $0xc4] sm:$0xf]
    %v415 = vld [vmem:[#allocation7 + $0xc8] sm:$0xf]
    %v416 = vld [vmem:[#allocation7 + $0xcc] sm:$0xf]
    %v417 = vld [vmem:[#allocation7 + $0xd0] sm:$0xf]
    %v418 = vld [vmem:[#allocation7 + $0xd4] sm:$0xf]
    %v419 = vld [vmem:[#allocation7 + $0xd8] sm:$0xf]
    %v420 = vld [vmem:[#allocation7 + $0xdc] sm:$0xf]
    %v421 = vld [vmem:[#allocation7 + $0xe0] sm:$0xf]
    %v422 = vld [vmem:[#allocation7 + $0xe4] sm:$0xf]
    %v423 = vld [vmem:[#allocation7 + $0xe8] sm:$0xf]
    %v424 = vld [vmem:[#allocation7 + $0xec] sm:$0xf]
    %v425 = vld [vmem:[#allocation7 + $0xf0] sm:$0xf]
    %v426 = vld [vmem:[#allocation7 + $0xf4] sm:$0xf]
    %v427 = vld [vmem:[#allocation7 + $0xf8] sm:$0xf]
    %v428 = vld [vmem:[#allocation7 + $0xfc] sm:$0xf]
    %v429 = vld [vmem:[#allocation7 + $0x100] sm:$0xf]
    %v430 = vld [vmem:[#allocation7 + $0x104] sm:$0xf]
    %v431 = vld [vmem:[#allocation7 + $0x108] sm:$0xf]
    %v432 = vld [vmem:[#allocation7 + $0x10c] sm:$0xf]
    %v433 = vld [vmem:[#allocation7 + $0x110] sm:$0xf]
    %v434 = vld [vmem:[#allocation7 + $0x114] sm:$0xf]
    %v435 = vld [vmem:[#allocation7 + $0x118] sm:$0xf]
    %v436 = vld [vmem:[#allocation7 + $0x11c] sm:$0xf]
    %v437 = vld [vmem:[#allocation7 + $0x120] sm:$0xf]
    %v438 = vld [vmem:[#allocation7 + $0x124] sm:$0xf]
    %v439 = vld [vmem:[#allocation7 + $0x128] sm:$0xf]
    %v440 = vld [vmem:[#allocation7 + $0x12c] sm:$0xf]
    %v441 = vld [vmem:[#allocation7 + $0x130] sm:$0xf]
    %v442 = vld [vmem:[#allocation7 + $0x134] sm:$0xf]
    %v443 = vld [vmem:[#allocation7 + $0x138] sm:$0xf]
    %v444 = vld [vmem:[#allocation7 + $0x13c] sm:$0xf]
    %v445 = vld [vmem:[#allocation7 + $0x140] sm:$0xf]
    %v446 = vld [vmem:[#allocation7 + $0x144] sm:$0xf]
    %v447 = vld [vmem:[#allocation7 + $0x148] sm:$0xf]
    %v448 = vld [vmem:[#allocation7 + $0x14c] sm:$0xf]
    %v449 = vld [vmem:[#allocation7 + $0x150] sm:$0xf]
    %v450 = vld [vmem:[#allocation7 + $0x154] sm:$0xf]
    %v451 = vld [vmem:[#allocation7 + $0x158] sm:$0xf]
    %v452 = vld [vmem:[#allocation7 + $0x15c] sm:$0xf]
    %v453 = vld [vmem:[#allocation7 + $0x160] sm:$0xf]
    %v454 = vld [vmem:[#allocation7 + $0x164] sm:$0xf]
    %v455 = vld [vmem:[#allocation7 + $0x168] sm:$0xf]
    %v456 = vld [vmem:[#allocation7 + $0x16c] sm:$0xf]
    %v457 = vld [vmem:[#allocation7 + $0x170] sm:$0xf]
    %v458 = vld [vmem:[#allocation7 + $0x174] sm:$0xf]
    %v459 = vld [vmem:[#allocation7 + $0x178] sm:$0xf]
    %v460 = vld [vmem:[#allocation7 + $0x17c] sm:$0xf]
    %v461 = vld [vmem:[#allocation7 + $0x180] sm:$0xf]
    %v462 = vld [vmem:[#allocation7 + $0x184] sm:$0xf]
    %v463 = vld [vmem:[#allocation7 + $0x188] sm:$0xf]
    %v464 = vld [vmem:[#allocation7 + $0x18c] sm:$0xf]
    %v465 = vld [vmem:[#allocation7 + $0x190] sm:$0xf]
    %v466 = vld [vmem:[#allocation7 + $0x194] sm:$0xf]
    %v467 = vld [vmem:[#allocation7 + $0x198] sm:$0xf]
    %v468 = vld [vmem:[#allocation7 + $0x19c] sm:$0xf]
    %v469 = vld [vmem:[#allocation7 + $0x1a0] sm:$0xf]
    %v470 = vld [vmem:[#allocation7 + $0x1a4] sm:$0xf]
    %v471 = vld [vmem:[#allocation7 + $0x1a8] sm:$0xf]
    %v472 = vld [vmem:[#allocation7 + $0x1ac] sm:$0xf]
    %v473 = vld [vmem:[#allocation7 + $0x1b0] sm:$0xf]
    %v474 = vld [vmem:[#allocation7 + $0x1b4] sm:$0xf]
    %v475 = vld [vmem:[#allocation7 + $0x1b8] sm:$0xf]
    %v476 = vld [vmem:[#allocation7 + $0x1bc] sm:$0xf]
    %v477 = vld [vmem:[#allocation7 + $0x1c0] sm:$0xf]
    %v478 = vld [vmem:[#allocation7 + $0x1c4] sm:$0xf]
    %v479 = vld [vmem:[#allocation7 + $0x1c8] sm:$0xf]
    %v480 = vld [vmem:[#allocation7 + $0x1cc] sm:$0xf]
    %v481 = vld [vmem:[#allocation7 + $0x1d0] sm:$0xf]
    %v482 = vld [vmem:[#allocation7 + $0x1d4] sm:$0xf]
    %v483 = vld [vmem:[#allocation7 + $0x1d8] sm:$0xf]
    %v484 = vld [vmem:[#allocation7 + $0x1dc] sm:$0xf]
    %v485 = vld [vmem:[#allocation7 + $0x1e0] sm:$0xf]
    %v486 = vld [vmem:[#allocation7 + $0x1e4] sm:$0xf]
    %v487 = vld [vmem:[#allocation7 + $0x1e8] sm:$0xf]
    %v488 = vld [vmem:[#allocation7 + $0x1ec] sm:$0xf]
    %v489 = vld [vmem:[#allocation7 + $0x1f0] sm:$0xf]
    %v490 = vld [vmem:[#allocation7 + $0x1f4] sm:$0xf]
    %v491 = vld [vmem:[#allocation7 + $0x1f8] sm:$0xf]
    %v492 = vld [vmem:[#allocation7 + $0x1fc] sm:$0xf]
    %v493 = vunpack.c.l.bf16 %v365
    %v494 = vunpack.c.l.bf16 %v366
    %v495 = vunpack.c.l.bf16 %v367
    %v496 = vunpack.c.l.bf16 %v368
    %v497 = vunpack.c.l.bf16 %v369
    %v498 = vunpack.c.l.bf16 %v370
    %v499 = vunpack.c.l.bf16 %v371
    %v500 = vunpack.c.l.bf16 %v372
    %v501 = vunpack.c.l.bf16 %v373
    %v502 = vunpack.c.l.bf16 %v374
    %v503 = vunpack.c.l.bf16 %v375
    %v504 = vunpack.c.l.bf16 %v376
    %v505 = vunpack.c.l.bf16 %v377
    %v506 = vunpack.c.l.bf16 %v378
    %v507 = vunpack.c.l.bf16 %v379
    %v508 = vunpack.c.l.bf16 %v380
    %v509 = vunpack.c.l.bf16 %v381
    %v510 = vunpack.c.l.bf16 %v382
    %v511 = vunpack.c.l.bf16 %v383
    %v512 = vunpack.c.l.bf16 %v384
    %v513 = vunpack.c.l.bf16 %v385
    %v514 = vunpack.c.l.bf16 %v386
    %v515 = vunpack.c.l.bf16 %v387
    %v516 = vunpack.c.l.bf16 %v388
    %v517 = vunpack.c.l.bf16 %v389
    %v518 = vunpack.c.l.bf16 %v390
    %v519 = vunpack.c.l.bf16 %v391
    %v520 = vunpack.c.l.bf16 %v392
    %v521 = vunpack.c.l.bf16 %v393
    %v522 = vunpack.c.l.bf16 %v394
    %v523 = vunpack.c.l.bf16 %v395
    %v524 = vunpack.c.l.bf16 %v396
    %v525 = vunpack.c.l.bf16 %v397
    %v526 = vunpack.c.l.bf16 %v398
    %v527 = vunpack.c.l.bf16 %v399
    %v528 = vunpack.c.l.bf16 %v400
    %v529 = vunpack.c.l.bf16 %v401
    %v530 = vunpack.c.l.bf16 %v402
    %v531 = vunpack.c.l.bf16 %v403
    %v532 = vunpack.c.l.bf16 %v404
    %v533 = vunpack.c.l.bf16 %v405
    %v534 = vunpack.c.l.bf16 %v406
    %v535 = vunpack.c.l.bf16 %v407
    %v536 = vunpack.c.l.bf16 %v408
    %v537 = vunpack.c.l.bf16 %v409
    %v538 = vunpack.c.l.bf16 %v410
    %v539 = vunpack.c.l.bf16 %v411
    %v540 = vunpack.c.l.bf16 %v412
    %v541 = vunpack.c.l.bf16 %v413
    %v542 = vunpack.c.l.bf16 %v414
    %v543 = vunpack.c.l.bf16 %v415
    %v544 = vunpack.c.l.bf16 %v416
    %v545 = vunpack.c.l.bf16 %v417
    %v546 = vunpack.c.l.bf16 %v418
    %v547 = vunpack.c.l.bf16 %v419
    %v548 = vunpack.c.l.bf16 %v420
    %v549 = vunpack.c.l.bf16 %v421
    %v550 = vunpack.c.l.bf16 %v422
    %v551 = vunpack.c.l.bf16 %v423
    %v552 = vunpack.c.l.bf16 %v424
    %v553 = vunpack.c.l.bf16 %v425
    %v554 = vunpack.c.l.bf16 %v426
    %v555 = vunpack.c.l.bf16 %v427
    %v556 = vunpack.c.l.bf16 %v428
    %v557 = vunpack.c.l.bf16 %v429
    %v558 = vunpack.c.l.bf16 %v430
    %v559 = vunpack.c.l.bf16 %v431
    %v560 = vunpack.c.l.bf16 %v432
    %v561 = vunpack.c.l.bf16 %v433
    %v562 = vunpack.c.l.bf16 %v434
    %v563 = vunpack.c.l.bf16 %v435
    %v564 = vunpack.c.l.bf16 %v436
    %v565 = vunpack.c.l.bf16 %v437
    %v566 = vunpack.c.l.bf16 %v438
    %v567 = vunpack.c.l.bf16 %v439
    %v568 = vunpack.c.l.bf16 %v440
    %v569 = vunpack.c.l.bf16 %v441
    %v570 = vunpack.c.l.bf16 %v442
    %v571 = vunpack.c.l.bf16 %v443
    %v572 = vunpack.c.l.bf16 %v444
    %v573 = vunpack.c.l.bf16 %v445
    %v574 = vunpack.c.l.bf16 %v446
    %v575 = vunpack.c.l.bf16 %v447
    %v576 = vunpack.c.l.bf16 %v448
    %v577 = vunpack.c.l.bf16 %v449
    %v578 = vunpack.c.l.bf16 %v450
    %v579 = vunpack.c.l.bf16 %v451
    %v580 = vunpack.c.l.bf16 %v452
    %v581 = vunpack.c.l.bf16 %v453
    %v582 = vunpack.c.l.bf16 %v454
    %v583 = vunpack.c.l.bf16 %v455
    %v584 = vunpack.c.l.bf16 %v456
    %v585 = vunpack.c.l.bf16 %v457
    %v586 = vunpack.c.l.bf16 %v458
    %v587 = vunpack.c.l.bf16 %v459
    %v588 = vunpack.c.l.bf16 %v460
    %v589 = vunpack.c.l.bf16 %v461
    %v590 = vunpack.c.l.bf16 %v462
    %v591 = vunpack.c.l.bf16 %v463
    %v592 = vunpack.c.l.bf16 %v464
    %v593 = vunpack.c.l.bf16 %v465
    %v594 = vunpack.c.l.bf16 %v466
    %v595 = vunpack.c.l.bf16 %v467
    %v596 = vunpack.c.l.bf16 %v468
    %v597 = vunpack.c.l.bf16 %v469
    %v598 = vunpack.c.l.bf16 %v470
    %v599 = vunpack.c.l.bf16 %v471
    %v600 = vunpack.c.l.bf16 %v472
    %v601 = vunpack.c.l.bf16 %v473
    %v602 = vunpack.c.l.bf16 %v474
    %v603 = vunpack.c.l.bf16 %v475
    %v604 = vunpack.c.l.bf16 %v476
    %v605 = vunpack.c.l.bf16 %v477
    %v606 = vunpack.c.l.bf16 %v478
    %v607 = vunpack.c.l.bf16 %v479
    %v608 = vunpack.c.l.bf16 %v480
    %v609 = vunpack.c.l.bf16 %v481
    %v610 = vunpack.c.l.bf16 %v482
    %v611 = vunpack.c.l.bf16 %v483
    %v612 = vunpack.c.l.bf16 %v484
    %v613 = vunpack.c.l.bf16 %v485
    %v614 = vunpack.c.l.bf16 %v486
    %v615 = vunpack.c.l.bf16 %v487
    %v616 = vunpack.c.l.bf16 %v488
    %v617 = vunpack.c.l.bf16 %v489
    %v618 = vunpack.c.l.bf16 %v490
    %v619 = vunpack.c.l.bf16 %v491
    %v620 = vunpack.c.l.bf16 %v492
    %v621 = vld [vmem:[#allocation5] sm:$0xf]
    %v622 = vld [vmem:[#allocation5 + $0x4] sm:$0xf]
    %v623 = vld [vmem:[#allocation5 + $0x8] sm:$0xf]
    %v624 = vld [vmem:[#allocation5 + $0xc] sm:$0xf]
    %v625 = vld [vmem:[#allocation5 + $0x10] sm:$0xf]
    %v626 = vld [vmem:[#allocation5 + $0x14] sm:$0xf]
    %v627 = vld [vmem:[#allocation5 + $0x18] sm:$0xf]
    %v628 = vld [vmem:[#allocation5 + $0x1c] sm:$0xf]
    %v629 = vld [vmem:[#allocation5 + $0x20] sm:$0xf]
    %v630 = vld [vmem:[#allocation5 + $0x24] sm:$0xf]
    %v631 = vld [vmem:[#allocation5 + $0x28] sm:$0xf]
    %v632 = vld [vmem:[#allocation5 + $0x2c] sm:$0xf]
    %v633 = vld [vmem:[#allocation5 + $0x30] sm:$0xf]
    %v634 = vld [vmem:[#allocation5 + $0x34] sm:$0xf]
    %v635 = vld [vmem:[#allocation5 + $0x38] sm:$0xf]
    %v636 = vld [vmem:[#allocation5 + $0x3c] sm:$0xf]
    %v637 = vld [vmem:[#allocation5 + $0x40] sm:$0xf]
    %v638 = vld [vmem:[#allocation5 + $0x44] sm:$0xf]
    %v639 = vld [vmem:[#allocation5 + $0x48] sm:$0xf]
    %v640 = vld [vmem:[#allocation5 + $0x4c] sm:$0xf]
    %v641 = vld [vmem:[#allocation5 + $0x50] sm:$0xf]
    %v642 = vld [vmem:[#allocation5 + $0x54] sm:$0xf]
    %v643 = vld [vmem:[#allocation5 + $0x58] sm:$0xf]
    %v644 = vld [vmem:[#allocation5 + $0x5c] sm:$0xf]
    %v645 = vld [vmem:[#allocation5 + $0x60] sm:$0xf]
    %v646 = vld [vmem:[#allocation5 + $0x64] sm:$0xf]
    %v647 = vld [vmem:[#allocation5 + $0x68] sm:$0xf]
    %v648 = vld [vmem:[#allocation5 + $0x6c] sm:$0xf]
    %v649 = vld [vmem:[#allocation5 + $0x70] sm:$0xf]
    %v650 = vld [vmem:[#allocation5 + $0x74] sm:$0xf]
    %v651 = vld [vmem:[#allocation5 + $0x78] sm:$0xf]
    %v652 = vld [vmem:[#allocation5 + $0x7c] sm:$0xf]
    %v653 = vunpack.c.l.bf16 %v621
    %v654 = vunpack.c.l.bf16 %v622
    %v655 = vunpack.c.l.bf16 %v623
    %v656 = vunpack.c.l.bf16 %v624
    %v657 = vunpack.c.l.bf16 %v625
    %v658 = vunpack.c.l.bf16 %v626
    %v659 = vunpack.c.l.bf16 %v627
    %v660 = vunpack.c.l.bf16 %v628
    %v661 = vunpack.c.l.bf16 %v629
    %v662 = vunpack.c.l.bf16 %v630
    %v663 = vunpack.c.l.bf16 %v631
    %v664 = vunpack.c.l.bf16 %v632
    %v665 = vunpack.c.l.bf16 %v633
    %v666 = vunpack.c.l.bf16 %v634
    %v667 = vunpack.c.l.bf16 %v635
    %v668 = vunpack.c.l.bf16 %v636
    %v669 = vunpack.c.l.bf16 %v637
    %v670 = vunpack.c.l.bf16 %v638
    %v671 = vunpack.c.l.bf16 %v639
    %v672 = vunpack.c.l.bf16 %v640
    %v673 = vunpack.c.l.bf16 %v641
    %v674 = vunpack.c.l.bf16 %v642
    %v675 = vunpack.c.l.bf16 %v643
    %v676 = vunpack.c.l.bf16 %v644
    %v677 = vunpack.c.l.bf16 %v645
    %v678 = vunpack.c.l.bf16 %v646
    %v679 = vunpack.c.l.bf16 %v647
    %v680 = vunpack.c.l.bf16 %v648
    %v681 = vunpack.c.l.bf16 %v649
    %v682 = vunpack.c.l.bf16 %v650
    %v683 = vunpack.c.l.bf16 %v651
    %v684 = vunpack.c.l.bf16 %v652
    %685 = vmatprep.subr.mxu0 0.0
    %686 = vmatpush1.msra.mxu0 %v653
    %687 = vmatprep.subr.mxu0 0.0
    %688 = vmatpush1.msra.mxu0 %v654
    %689 = vmatprep.subr.mxu0 0.0
    %690 = vmatpush1.msra.mxu0 %v655
    %691 = vmatprep.subr.mxu0 0.0
    %692 = vmatpush1.msra.mxu0 %v656
    %693 = vmatprep.subr.mxu0 0.0
    %694 = vmatpush1.msra.mxu0 %v657
    %695 = vmatprep.subr.mxu0 0.0
    %696 = vmatpush1.msra.mxu0 %v658
    %697 = vmatprep.subr.mxu0 0.0
    %698 = vmatpush1.msra.mxu0 %v659
    %699 = vmatprep.subr.mxu0 0.0
    %700 = vmatpush1.msra.mxu0 %v660
    %701 = vmatprep.subr.mxu0 0.0
    %702 = vmatpush1.msra.mxu0 %v661
    %703 = vmatprep.subr.mxu0 0.0
    %704 = vmatpush1.msra.mxu0 %v662
    %705 = vmatprep.subr.mxu0 0.0
    %706 = vmatpush1.msra.mxu0 %v663
    %707 = vmatprep.subr.mxu0 0.0
    %708 = vmatpush1.msra.mxu0 %v664
    %709 = vmatprep.subr.mxu0 0.0
    %710 = vmatpush1.msra.mxu0 %v665
    %711 = vmatprep.subr.mxu0 0.0
    %712 = vmatpush1.msra.mxu0 %v666
    %713 = vmatprep.subr.mxu0 0.0
    %714 = vmatpush1.msra.mxu0 %v667
    %715 = vmatprep.subr.mxu0 0.0
    %716 = vmatpush1.msra.mxu0 %v668
    %717 = vmatprep.subr.mxu0 0.0
    %718 = vmatpush1.msra.mxu0 %v669
    %719 = vmatprep.subr.mxu0 0.0
    %720 = vmatpush1.msra.mxu0 %v670
    %721 = vmatprep.subr.mxu0 0.0
    %722 = vmatpush1.msra.mxu0 %v671
    %723 = vmatprep.subr.mxu0 0.0
    %724 = vmatpush1.msra.mxu0 %v672
    %725 = vmatprep.subr.mxu0 0.0
    %726 = vmatpush1.msra.mxu0 %v673
    %727 = vmatprep.subr.mxu0 0.0
    %728 = vmatpush1.msra.mxu0 %v674
    %729 = vmatprep.subr.mxu0 0.0
    %730 = vmatpush1.msra.mxu0 %v675
    %731 = vmatprep.subr.mxu0 0.0
    %732 = vmatpush1.msra.mxu0 %v676
    %733 = vmatprep.subr.mxu0 0.0
    %734 = vmatpush1.msra.mxu0 %v677
    %735 = vmatprep.subr.mxu0 0.0
    %736 = vmatpush1.msra.mxu0 %v678
    %737 = vmatprep.subr.mxu0 0.0
    %738 = vmatpush1.msra.mxu0 %v679
    %739 = vmatprep.subr.mxu0 0.0
    %740 = vmatpush1.msra.mxu0 %v680
    %741 = vmatprep.subr.mxu0 0.0
    %742 = vmatpush1.msra.mxu0 %v681
    %743 = vmatprep.subr.mxu0 0.0
    %744 = vmatpush1.msra.mxu0 %v682
    %745 = vmatprep.subr.mxu0 0.0
    %746 = vmatpush1.msra.mxu0 %v683
    %747 = vmatprep.subr.mxu0 0.0
    %748 = vmatpush1.msra.mxu0 %v684
    %749 = vmatprep.mubr.f32.mxu0 %v362
    %750 = vmatmul.mubr.f32.gmra.mrb[0].mxu0 %v359
    %v751 = vpop.f32.mrb[0].mxu0
    %v752 = vadd.f32 0.0, %v751
    %v753 = vpop.f32.mrb[0].mxu0
    %754 = vdwg.mxu0
    %v757 = vcombine.high %v363, %v363
    %v759 = vunpack.c.l.s4 1983009808
    %v760 = vunpack.c.0.s8 %v759
    %v761 = vlaneseq
    %v762 = vshrl.u32 %v761, 7
    %v763 = vsub.s32 %v760, %v762
    %v764 = vrot.slane %v363, %v763
    %v766 = vunpack.c.l.s4 1983009808
    %v767 = vunpack.c.0.s8 %v766
    %v768 = vlaneseq
    %v769 = vshrl.u32 %v768, 7
    %v770 = vsub.s32 %v767, %v769
    %v771 = vrot.slane %v757, %v770
    %v772 = vcombine.high %v764, %v764
    %v773 = vcombine.high %v771, %v771
    %v774 = vcombine.high %v364, %v364
    %v776 = vunpack.c.l.s4 1983009808
    %v777 = vunpack.c.0.s8 %v776
    %v778 = vlaneseq
    %v779 = vshrl.u32 %v778, 7
    %v780 = vsub.s32 %v777, %v779
    %v781 = vrot.slane %v364, %v780
    %v783 = vunpack.c.l.s4 1983009808
    %v784 = vunpack.c.0.s8 %v783
    %v785 = vlaneseq
    %v786 = vshrl.u32 %v785, 7
    %v787 = vsub.s32 %v784, %v786
    %v788 = vrot.slane %v774, %v787
    %v789 = vcombine.high %v781, %v781
    %v790 = vcombine.high %v788, %v788
    %799 = vmatprep.subr.mxu0 0.0
    %800 = vmatpush1.msra.mxu0 %v493
    %801 = vmatprep.subr.mxu0 0.0
    %802 = vmatpush1.msra.mxu0 %v494
    %803 = vmatprep.subr.mxu0 0.0
    %804 = vmatpush1.msra.mxu0 %v495
    %805 = vmatprep.subr.mxu0 0.0
    %806 = vmatpush1.msra.mxu0 %v496
    %807 = vmatprep.subr.mxu0 0.0
    %808 = vmatpush1.msra.mxu0 %v497
    %809 = vmatprep.subr.mxu0 0.0
    %810 = vmatpush1.msra.mxu0 %v498
    %811 = vmatprep.subr.mxu0 0.0
    %812 = vmatpush1.msra.mxu0 %v499
    %813 = vmatprep.subr.mxu0 0.0
    %814 = vmatpush1.msra.mxu0 %v500
    %815 = vmatprep.subr.mxu0 0.0
    %816 = vmatpush1.msra.mxu0 %v501
    %817 = vmatprep.subr.mxu0 0.0
    %818 = vmatpush1.msra.mxu0 %v502
    %819 = vmatprep.subr.mxu0 0.0
    %820 = vmatpush1.msra.mxu0 %v503
    %821 = vmatprep.subr.mxu0 0.0
    %822 = vmatpush1.msra.mxu0 %v504
    %823 = vmatprep.subr.mxu0 0.0
    %824 = vmatpush1.msra.mxu0 %v505
    %825 = vmatprep.subr.mxu0 0.0
    %826 = vmatpush1.msra.mxu0 %v506
    %827 = vmatprep.subr.mxu0 0.0
    %828 = vmatpush1.msra.mxu0 %v507
    %829 = vmatprep.subr.mxu0 0.0
    %830 = vmatpush1.msra.mxu0 %v508
    %831 = vmatprep.subr.mxu0 0.0
    %832 = vmatpush1.msra.mxu0 %v509
    %833 = vmatprep.subr.mxu0 0.0
    %834 = vmatpush1.msra.mxu0 %v510
    %835 = vmatprep.subr.mxu0 0.0
    %836 = vmatpush1.msra.mxu0 %v511
    %837 = vmatprep.subr.mxu0 0.0
    %838 = vmatpush1.msra.mxu0 %v512
    %839 = vmatprep.subr.mxu0 0.0
    %840 = vmatpush1.msra.mxu0 %v513
    %841 = vmatprep.subr.mxu0 0.0
    %842 = vmatpush1.msra.mxu0 %v514
    %843 = vmatprep.subr.mxu0 0.0
    %844 = vmatpush1.msra.mxu0 %v515
    %845 = vmatprep.subr.mxu0 0.0
    %846 = vmatpush1.msra.mxu0 %v516
    %847 = vmatprep.subr.mxu0 0.0
    %848 = vmatpush1.msra.mxu0 %v517
    %849 = vmatprep.subr.mxu0 0.0
    %850 = vmatpush1.msra.mxu0 %v518
    %851 = vmatprep.subr.mxu0 0.0
    %852 = vmatpush1.msra.mxu0 %v519
    %853 = vmatprep.subr.mxu0 0.0
    %854 = vmatpush1.msra.mxu0 %v520
    %855 = vmatprep.subr.mxu0 0.0
    %856 = vmatpush1.msra.mxu0 %v521
    %857 = vmatprep.subr.mxu0 0.0
    %858 = vmatpush1.msra.mxu0 %v522
    %859 = vmatprep.subr.mxu0 0.0
    %860 = vmatpush1.msra.mxu0 %v523
    %861 = vmatprep.subr.mxu0 0.0
    %862 = vmatpush1.msra.mxu0 %v524
    %863 = vmatprep.mubr.f32.mxu0 %v772
    %864 = vmatmul.mubr.f32.gmra.mrb[0].mxu0 %v764
    %v865 = vpop.f32.mrb[0].mxu0
    %v866 = vadd.f32 %v752, %v865
    %v867 = vpop.f32.mrb[0].mxu0
    %868 = vdwg.mxu0
    %869 = vmatprep.subr.mxu0 0.0
    %870 = vmatpush1.msra.mxu0 %v525
    %871 = vmatprep.subr.mxu0 0.0
    %872 = vmatpush1.msra.mxu0 %v526
    %873 = vmatprep.subr.mxu0 0.0
    %874 = vmatpush1.msra.mxu0 %v527
    %875 = vmatprep.subr.mxu0 0.0
    %876 = vmatpush1.msra.mxu0 %v528
    %877 = vmatprep.subr.mxu0 0.0
    %878 = vmatpush1.msra.mxu0 %v529
    %879 = vmatprep.subr.mxu0 0.0
    %880 = vmatpush1.msra.mxu0 %v530
    %881 = vmatprep.subr.mxu0 0.0
    %882 = vmatpush1.msra.mxu0 %v531
    %883 = vmatprep.subr.mxu0 0.0
    %884 = vmatpush1.msra.mxu0 %v532
    %885 = vmatprep.subr.mxu0 0.0
    %886 = vmatpush1.msra.mxu0 %v533
    %887 = vmatprep.subr.mxu0 0.0
    %888 = vmatpush1.msra.mxu0 %v534
    %889 = vmatprep.subr.mxu0 0.0
    %890 = vmatpush1.msra.mxu0 %v535
    %891 = vmatprep.subr.mxu0 0.0
    %892 = vmatpush1.msra.mxu0 %v536
    %893 = vmatprep.subr.mxu0 0.0
    %894 = vmatpush1.msra.mxu0 %v537
    %895 = vmatprep.subr.mxu0 0.0
    %896 = vmatpush1.msra.mxu0 %v538
    %897 = vmatprep.subr.mxu0 0.0
    %898 = vmatpush1.msra.mxu0 %v539
    %899 = vmatprep.subr.mxu0 0.0
    %900 = vmatpush1.msra.mxu0 %v540
    %901 = vmatprep.subr.mxu0 0.0
    %902 = vmatpush1.msra.mxu0 %v541
    %903 = vmatprep.subr.mxu0 0.0
    %904 = vmatpush1.msra.mxu0 %v542
    %905 = vmatprep.subr.mxu0 0.0
    %906 = vmatpush1.msra.mxu0 %v543
    %907 = vmatprep.subr.mxu0 0.0
    %908 = vmatpush1.msra.mxu0 %v544
    %909 = vmatprep.subr.mxu0 0.0
    %910 = vmatpush1.msra.mxu0 %v545
    %911 = vmatprep.subr.mxu0 0.0
    %912 = vmatpush1.msra.mxu0 %v546
    %913 = vmatprep.subr.mxu0 0.0
    %914 = vmatpush1.msra.mxu0 %v547
    %915 = vmatprep.subr.mxu0 0.0
    %916 = vmatpush1.msra.mxu0 %v548
    %917 = vmatprep.subr.mxu0 0.0
    %918 = vmatpush1.msra.mxu0 %v549
    %919 = vmatprep.subr.mxu0 0.0
    %920 = vmatpush1.msra.mxu0 %v550
    %921 = vmatprep.subr.mxu0 0.0
    %922 = vmatpush1.msra.mxu0 %v551
    %923 = vmatprep.subr.mxu0 0.0
    %924 = vmatpush1.msra.mxu0 %v552
    %925 = vmatprep.subr.mxu0 0.0
    %926 = vmatpush1.msra.mxu0 %v553
    %927 = vmatprep.subr.mxu0 0.0
    %928 = vmatpush1.msra.mxu0 %v554
    %929 = vmatprep.subr.mxu0 0.0
    %930 = vmatpush1.msra.mxu0 %v555
    %931 = vmatprep.subr.mxu0 0.0
    %932 = vmatpush1.msra.mxu0 %v556
    %933 = vmatprep.mubr.f32.mxu0 %v773
    %934 = vmatmul.mubr.f32.gmra.mrb[0].mxu0 %v771
    %v935 = vpop.f32.mrb[0].mxu0
    %v936 = vadd.f32 %v866, %v935
    %v937 = vpop.f32.mrb[0].mxu0
    %938 = vdwg.mxu0
    %939 = vmatprep.subr.mxu0 0.0
    %940 = vmatpush1.msra.mxu0 %v557
    %941 = vmatprep.subr.mxu0 0.0
    %942 = vmatpush1.msra.mxu0 %v558
    %943 = vmatprep.subr.mxu0 0.0
    %944 = vmatpush1.msra.mxu0 %v559
    %945 = vmatprep.subr.mxu0 0.0
    %946 = vmatpush1.msra.mxu0 %v560
    %947 = vmatprep.subr.mxu0 0.0
    %948 = vmatpush1.msra.mxu0 %v561
    %949 = vmatprep.subr.mxu0 0.0
    %950 = vmatpush1.msra.mxu0 %v562
    %951 = vmatprep.subr.mxu0 0.0
    %952 = vmatpush1.msra.mxu0 %v563
    %953 = vmatprep.subr.mxu0 0.0
    %954 = vmatpush1.msra.mxu0 %v564
    %955 = vmatprep.subr.mxu0 0.0
    %956 = vmatpush1.msra.mxu0 %v565
    %957 = vmatprep.subr.mxu0 0.0
    %958 = vmatpush1.msra.mxu0 %v566
    %959 = vmatprep.subr.mxu0 0.0
    %960 = vmatpush1.msra.mxu0 %v567
    %961 = vmatprep.subr.mxu0 0.0
    %962 = vmatpush1.msra.mxu0 %v568
    %963 = vmatprep.subr.mxu0 0.0
    %964 = vmatpush1.msra.mxu0 %v569
    %965 = vmatprep.subr.mxu0 0.0
    %966 = vmatpush1.msra.mxu0 %v570
    %967 = vmatprep.subr.mxu0 0.0
    %968 = vmatpush1.msra.mxu0 %v571
    %969 = vmatprep.subr.mxu0 0.0
    %970 = vmatpush1.msra.mxu0 %v572
    %971 = vmatprep.subr.mxu0 0.0
    %972 = vmatpush1.msra.mxu0 %v573
    %973 = vmatprep.subr.mxu0 0.0
    %974 = vmatpush1.msra.mxu0 %v574
    %975 = vmatprep.subr.mxu0 0.0
    %976 = vmatpush1.msra.mxu0 %v575
    %977 = vmatprep.subr.mxu0 0.0
    %978 = vmatpush1.msra.mxu0 %v576
    %979 = vmatprep.subr.mxu0 0.0
    %980 = vmatpush1.msra.mxu0 %v577
    %981 = vmatprep.subr.mxu0 0.0
    %982 = vmatpush1.msra.mxu0 %v578
    %983 = vmatprep.subr.mxu0 0.0
    %984 = vmatpush1.msra.mxu0 %v579
    %985 = vmatprep.subr.mxu0 0.0
    %986 = vmatpush1.msra.mxu0 %v580
    %987 = vmatprep.subr.mxu0 0.0
    %988 = vmatpush1.msra.mxu0 %v581
    %989 = vmatprep.subr.mxu0 0.0
    %990 = vmatpush1.msra.mxu0 %v582
    %991 = vmatprep.subr.mxu0 0.0
    %992 = vmatpush1.msra.mxu0 %v583
    %993 = vmatprep.subr.mxu0 0.0
    %994 = vmatpush1.msra.mxu0 %v584
    %995 = vmatprep.subr.mxu0 0.0
    %996 = vmatpush1.msra.mxu0 %v585
    %997 = vmatprep.subr.mxu0 0.0
    %998 = vmatpush1.msra.mxu0 %v586
    %999 = vmatprep.subr.mxu0 0.0
    %1000 = vmatpush1.msra.mxu0 %v587
    %1001 = vmatprep.subr.mxu0 0.0
    %1002 = vmatpush1.msra.mxu0 %v588
    %1003 = vmatprep.mubr.f32.mxu0 %v789
    %1004 = vmatmul.mubr.f32.gmra.mrb[0].mxu0 %v781
    %v1005 = vpop.f32.mrb[0].mxu0
    %v1006 = vadd.f32 %v936, %v1005
    %v1007 = vpop.f32.mrb[0].mxu0
    %1008 = vdwg.mxu0
    %1009 = vmatprep.subr.mxu0 0.0
    %1010 = vmatpush1.msra.mxu0 %v589
    %1011 = vmatprep.subr.mxu0 0.0
    %1012 = vmatpush1.msra.mxu0 %v590
    %1013 = vmatprep.subr.mxu0 0.0
    %1014 = vmatpush1.msra.mxu0 %v591
    %1015 = vmatprep.subr.mxu0 0.0
    %1016 = vmatpush1.msra.mxu0 %v592
    %1017 = vmatprep.subr.mxu0 0.0
    %1018 = vmatpush1.msra.mxu0 %v593
    %1019 = vmatprep.subr.mxu0 0.0
    %1020 = vmatpush1.msra.mxu0 %v594
    %1021 = vmatprep.subr.mxu0 0.0
    %1022 = vmatpush1.msra.mxu0 %v595
    %1023 = vmatprep.subr.mxu0 0.0
    %1024 = vmatpush1.msra.mxu0 %v596
    %1025 = vmatprep.subr.mxu0 0.0
    %1026 = vmatpush1.msra.mxu0 %v597
    %1027 = vmatprep.subr.mxu0 0.0
    %1028 = vmatpush1.msra.mxu0 %v598
    %1029 = vmatprep.subr.mxu0 0.0
    %1030 = vmatpush1.msra.mxu0 %v599
    %1031 = vmatprep.subr.mxu0 0.0
    %1032 = vmatpush1.msra.mxu0 %v600
    %1033 = vmatprep.subr.mxu0 0.0
    %1034 = vmatpush1.msra.mxu0 %v601
    %1035 = vmatprep.subr.mxu0 0.0
    %1036 = vmatpush1.msra.mxu0 %v602
    %1037 = vmatprep.subr.mxu0 0.0
    %1038 = vmatpush1.msra.mxu0 %v603
    %1039 = vmatprep.subr.mxu0 0.0
    %1040 = vmatpush1.msra.mxu0 %v604
    %1041 = vmatprep.subr.mxu0 0.0
    %1042 = vmatpush1.msra.mxu0 %v605
    %1043 = vmatprep.subr.mxu0 0.0
    %1044 = vmatpush1.msra.mxu0 %v606
    %1045 = vmatprep.subr.mxu0 0.0
    %1046 = vmatpush1.msra.mxu0 %v607
    %1047 = vmatprep.subr.mxu0 0.0
    %1048 = vmatpush1.msra.mxu0 %v608
    %1049 = vmatprep.subr.mxu0 0.0
    %1050 = vmatpush1.msra.mxu0 %v609
    %1051 = vmatprep.subr.mxu0 0.0
    %1052 = vmatpush1.msra.mxu0 %v610
    %1053 = vmatprep.subr.mxu0 0.0
    %1054 = vmatpush1.msra.mxu0 %v611
    %1055 = vmatprep.subr.mxu0 0.0
    %1056 = vmatpush1.msra.mxu0 %v612
    %1057 = vmatprep.subr.mxu0 0.0
    %1058 = vmatpush1.msra.mxu0 %v613
    %1059 = vmatprep.subr.mxu0 0.0
    %1060 = vmatpush1.msra.mxu0 %v614
    %1061 = vmatprep.subr.mxu0 0.0
    %1062 = vmatpush1.msra.mxu0 %v615
    %1063 = vmatprep.subr.mxu0 0.0
    %1064 = vmatpush1.msra.mxu0 %v616
    %1065 = vmatprep.subr.mxu0 0.0
    %1066 = vmatpush1.msra.mxu0 %v617
    %1067 = vmatprep.subr.mxu0 0.0
    %1068 = vmatpush1.msra.mxu0 %v618
    %1069 = vmatprep.subr.mxu0 0.0
    %1070 = vmatpush1.msra.mxu0 %v619
    %1071 = vmatprep.subr.mxu0 0.0
    %1072 = vmatpush1.msra.mxu0 %v620
    %1073 = vmatprep.mubr.f32.mxu0 %v790
    %1074 = vmatmul.mubr.f32.gmra.mrb[0].mxu0 %v788
    %v1075 = vpop.f32.mrb[0].mxu0
    %v1076 = vadd.f32 %v1006, %v1075
    %v1077 = vpop.f32.mrb[0].mxu0
    %1078 = vdwg.mxu0
    %v1079 = vld [vmem:[%s7] sm:$0x1]
    %v1081 = vlaneseq
    %v1082 = vshrl.u32 %v1081, 7
    %v1083 = vsub.s32 0, %v1082
    %v1084 = vrot.slane %v1079, %v1083
    %v1086 = vadd.f32 %v1076, %v1084
    %1087 = vst [vmem:[#allocation8] sm:$0x3] %v1086
    // Predicated region
    $region46: #{lstm_decoder_forward.1} parent=1 // pred_check
      _
    $region47: #{lstm_decoder_forward.1} parent=1 // pred_check_branch
      %1089 = sbr.rel (0) target = $region49
    $region48: #{lstm_decoder_forward.1} parent=1 // pred_region
      %s1091 = ssub.s32 32, 32
      %1092 = vsyncadd [#allocation4], %s1091
      %s1094 = sshll.u32 [#allocation8], 4
      %s1095 = int_to_ptr.vmem [resolvable:$true] %s1094
      %1097 = dma.vmem_to_hbm [thread:$0]  %s1095, 32, %s8, [#allocation4]
    $region49: #{lstm_decoder_forward.1} parent=1 // pred_fallthru
      _
    // Predicated region
    $region50: #{lstm_decoder_forward.1} parent=1 // pred_check
      _
    $region51: #{lstm_decoder_forward.1} parent=1 // pred_check_branch
      %1099 = sbr.rel (0) target = $region53
    $region52: #{lstm_decoder_forward.1} parent=1 // pred_region
      %1100 = dma.done [#allocation4], 32
    $region53: #{lstm_decoder_forward.1} parent=1 // pred_fallthru
      _
    %1101 = vsyncpa [#allocation3], 1
    %1102 = vsyncpa [#allocation6], 1
    %1103 = vsyncpa [#allocation4], 1

</llo_original>
